<compile_context>
chip_gen: v7x
topology: tpu7x:2x2x1
jax: 0.10.0
libtpu: 0.0.40
codegen_flags: <defaults>
</compile_context>

<pallas_src>
import math
import functools

import jax
import jax.numpy as jnp
from jax.experimental import pallas as pl
from jax.experimental.pallas import tpu as pltpu


def _round_up(x, m):
    return (x + m - 1) // m * m


def _vmem_limit_bytes():
    # ~75% of physical VMEM: ~96 MiB on v5e/v6e (128 MiB), ~48 MiB on v7x (64 MiB).
    try:
        info = pltpu.get_tpu_info()
        cap = getattr(info, "vmem_capacity_bytes", None)
        if cap:
            return int(cap) * 3 // 4
    except Exception:
        pass
    return 48 * 1024 * 1024


# -----------------------------------------------------------------------------
# Kernel 1: patch embedding (Conv2d with kernel=stride=patch -> row-tiled
# matmul).  Preprocessing (rescale + normalize) is already folded into w/b.
# -----------------------------------------------------------------------------
def patch_embed_kernel(p_ref, w_ref, b_ref, o_ref):
    # p_ref: (TM, K) f32, w_ref: (K, D) f32, b_ref: (1, D) f32
    o_ref[...] = (
        jnp.dot(p_ref[...], w_ref[...], preferred_element_type=jnp.float32)
        + b_ref[...]
    )


def patch_embed(x_nchw, w_kd, b_1d, patch):
    B, C, H, W = x_nchw.shape
    K, D = w_kd.shape
    nh, nw = H // patch, W // patch
    nP = nh * nw
    # patchify: (B, C, nh, P, nw, P) -> (B, nh, nw, C, P, P) -> (B*nP, C*P*P)
    patches = (
        x_nchw.astype(jnp.float32)
        .reshape(B, C, nh, patch, nw, patch)
        .transpose(0, 2, 4, 1, 3, 5)
        .reshape(B * nP, K)
    )
    rows = B * nP
    if rows >= 512:
        tm = 512
    elif rows >= 256:
        tm = 256
    else:
        tm = _round_up(rows, 8)
    rows_pad = _round_up(rows, tm)
    if rows_pad != rows:
        patches = jnp.pad(patches, ((0, rows_pad - rows), (0, 0)))

    out = pl.pallas_call(
        patch_embed_kernel,
        out_shape=jax.ShapeDtypeStruct((rows_pad, D), jnp.float32),
        grid=(rows_pad // tm,),
        in_specs=[
            pl.BlockSpec((tm, K), lambda i: (i, 0)),
            pl.BlockSpec((K, D), lambda i: (0, 0)),
            pl.BlockSpec((1, D), lambda i: (0, 0)),
        ],
        out_specs=pl.BlockSpec((tm, D), lambda i: (i, 0)),
        compiler_params=pltpu.CompilerParams(dimension_semantics=("parallel",)),
    )(patches, w_kd, b_1d)
    return out[:rows].reshape(B, nP, D)


# -----------------------------------------------------------------------------
# Kernel 2: fused transformer encoder stack (all layers) + final LN on CLS.
# Grid = (L,): the layer axis is sequential ("arbitrary"); the whole-batch
# hidden state (B*S_pad, D) lives in VMEM scratch across layers, so the
# per-layer weights are streamed from HBM exactly once per forward pass.
# -----------------------------------------------------------------------------
def _erf_approx(x):
    # Abramowitz & Stegun 7.1.26 rational approximation, |error| <= 1.5e-7.
    a1, a2, a3 = 0.254829592, -0.284496736, 1.421413741
    a4, a5, pc = -1.453152027, 1.061405429, 0.3275911
    sgn = jnp.where(x < 0.0, -1.0, 1.0)
    ax = jnp.abs(x)
    t = 1.0 / (1.0 + pc * ax)
    poly = ((((a5 * t + a4) * t + a3) * t + a2) * t + a1) * t
    return sgn * (1.0 - poly * jnp.exp(-ax * ax))


def encoder_kernel(
    pemb_ref, tok_ref, pospatch_ref,
    ln1g_ref, ln1b_ref,
    wq_ref, bq_ref, wk_ref, bk_ref, wv_ref, bv_ref,
    wo_ref, bo_ref,
    ln2g_ref, ln2b_ref,
    w1_ref, b1_ref, w2_ref, b2_ref,
    lnfg_ref, lnfb_ref,
    o_ref,
    h_scratch,
    *, batch, s_pad, n_patches, num_heads, head_dim, eps,
):
    l = pl.program_id(0)
    num_layers = pl.num_programs(0)
    B, S, nP = batch, s_pad, n_patches
    seq_real = nP + 2
    H, hd = num_heads, head_dim
    D = H * hd

    # l == 0: build the hidden state in VMEM.  Token order per image:
    # [patches..., cls, dist, zero padding]; cls/dist already include their
    # position embeddings (folded offline).
    @pl.when(l == 0)
    def _():
        h_scratch[...] = jnp.zeros_like(h_scratch)
        for b in range(B):
            base = b * S
            h_scratch[base:base + nP, :] = pemb_ref[b] + pospatch_ref[...]
            h_scratch[base + nP:base + nP + 2, :] = tok_ref[...]

    x = h_scratch[...]                       # (B*S, D) f32 carry

    def layer_norm(h, g, bta):
        mu = jnp.mean(h, axis=-1, keepdims=True)
        var = jnp.mean((h - mu) ** 2, axis=-1, keepdims=True)
        return (h - mu) * jax.lax.rsqrt(var + eps) * g + bta

    # --- self attention (layernorm_before -> MHA -> residual) ---
    h = layer_norm(x, ln1g_ref[0], ln1b_ref[0])
    hb = h.astype(jnp.bfloat16)
    q = jnp.dot(hb, wq_ref[0], preferred_element_type=jnp.float32) + bq_ref[0]
    k = jnp.dot(hb, wk_ref[0], preferred_element_type=jnp.float32) + bk_ref[0]
    v = jnp.dot(hb, wv_ref[0], preferred_element_type=jnp.float32) + bv_ref[0]
    q = q * (1.0 / math.sqrt(hd))            # fold the scale into q once

    kmask = jax.lax.broadcasted_iota(jnp.int32, (1, 1, S), 2) < seq_real

    ctx_rows = []
    for b in range(B):                        # static unroll; per-image attention
        sl = slice(b * S, (b + 1) * S)        # 128-aligned static slice
        qh = q[sl].reshape(S, H, hd).transpose(1, 0, 2)     # (H, S, hd)
        kh = k[sl].reshape(S, H, hd).transpose(1, 0, 2)
        vh = v[sl].reshape(S, H, hd).transpose(1, 0, 2)
        s = jnp.einsum(
            "hqd,hkd->hqk",
            qh.astype(jnp.bfloat16), kh.astype(jnp.bfloat16),
            preferred_element_type=jnp.float32,
        )
        if seq_real < S:                      # mask padded key columns (static)
            s = jnp.where(kmask, s, -1e30)
        s = s - jnp.max(s, axis=-1, keepdims=True)
        p = jnp.exp(s)
        p = p * pl.reciprocal(jnp.sum(p, axis=-1, keepdims=True), approx=True)
        ctx = jnp.einsum(
            "hqk,hkd->hqd",
            p.astype(jnp.bfloat16), vh.astype(jnp.bfloat16),
            preferred_element_type=jnp.float32,
        )
        ctx_rows.append(ctx.transpose(1, 0, 2).reshape(S, D))
    ctx = jnp.concatenate(ctx_rows, axis=0)   # (B*S, D)
    attn_out = (
        jnp.dot(ctx.astype(jnp.bfloat16), wo_ref[0],
                preferred_element_type=jnp.float32)
        + bo_ref[0]
    )
    x = x + attn_out

    # --- MLP (layernorm_after -> Linear -> GELU(erf) -> Linear -> residual) ---
    h2 = layer_norm(x, ln2g_ref[0], ln2b_ref[0])
    m = (
        jnp.dot(h2.astype(jnp.bfloat16), w1_ref[0],
                preferred_element_type=jnp.float32)
        + b1_ref[0]
    )
    m = 0.5 * m * (1.0 + _erf_approx(m * (1.0 / math.sqrt(2.0))))  # exact-erf GELU
    m = (
        jnp.dot(m.astype(jnp.bfloat16), w2_ref[0],
                preferred_element_type=jnp.float32)
        + b2_ref[0]
    )
    x = x + m

    h_scratch[...] = x

    # final layernorm on the CLS token (row nP of each image), fused into the
    # last layer iteration
    @pl.when(l == num_layers - 1)
    def _():
        g = lnfg_ref[...]
        bta = lnfb_ref[...]
        for b in range(B):
            cls = h_scratch[b * S + nP:b * S + nP + 1, :]   # (1, D)
            mu = jnp.mean(cls, axis=-1, keepdims=True)
            var = jnp.mean((cls - mu) ** 2, axis=-1, keepdims=True)
            o_ref[b] = (cls - mu) * jax.lax.rsqrt(var + eps) * g + bta


def encoder_stack(patch_emb, params, *, num_heads, eps, s_pad):
    B, nP, D = patch_emb.shape
    L = params["wq"].shape[0]
    Dff = params["w1"].shape[-1]

    def wspec(shape):   # per-layer stacked weight, streamed once per layer
        return pl.BlockSpec(shape, lambda l: (l, 0, 0))

    def cspec(shape):   # layer-constant input: fetched once, stays resident
        return pl.BlockSpec(shape, lambda l: (0, 0))

    in_specs = [
        pl.BlockSpec((B, nP, D), lambda l: (0, 0, 0)),     # patch embeddings
        cspec((2, D)),                                     # cls/dist tokens (+pos)
        cspec((nP, D)),                                    # patch position embeddings
        wspec((1, 1, D)), wspec((1, 1, D)),                # ln1 gamma / beta
        wspec((1, D, D)), wspec((1, 1, D)),                # Wq, bq
        wspec((1, D, D)), wspec((1, 1, D)),                # Wk, bk
        wspec((1, D, D)), wspec((1, 1, D)),                # Wv, bv
        wspec((1, D, D)), wspec((1, 1, D)),                # Wo, bo
        wspec((1, 1, D)), wspec((1, 1, D)),                # ln2 gamma / beta
        wspec((1, D, Dff)), wspec((1, 1, Dff)),            # W1, b1
        wspec((1, Dff, D)), wspec((1, 1, D)),              # W2, b2
        cspec((1, D)), cspec((1, D)),                      # final LN gamma / beta
    ]
    out_spec = pl.BlockSpec((B, 1, D), lambda l: (0, 0, 0))

    kern = functools.partial(
        encoder_kernel,
        batch=B, s_pad=s_pad, n_patches=nP,
        num_heads=num_heads, head_dim=D // num_heads, eps=eps,
    )
    out = pl.pallas_call(
        kern,
        out_shape=jax.ShapeDtypeStruct((B, 1, D), jnp.float32),
        grid=(L,),
        in_specs=in_specs,
        out_specs=out_spec,
        scratch_shapes=[pltpu.VMEM((B * s_pad, D), jnp.float32)],
        compiler_params=pltpu.CompilerParams(
            dimension_semantics=("arbitrary",),
            vmem_limit_bytes=_vmem_limit_bytes(),
        ),
    )(
        patch_emb,
        params["tok_pos"], params["pos_patch"],
        params["ln1_g"], params["ln1_b"],
        params["wq"], params["bq"], params["wk"], params["bk"],
        params["wv"], params["bv"], params["wo"], params["bo"],
        params["ln2_g"], params["ln2_b"],
        params["w1"], params["b1"], params["w2"], params["b2"],
        params["ln_f_g"], params["ln_f_b"],
    )
    return out.reshape(B, D)


# -----------------------------------------------------------------------------
# Full forward pass (glue in plain JAX, hot path in the Pallas kernels above).
# -----------------------------------------------------------------------------
def deit_forward(image_nchw, params, cfg):
    # 1+2. patch embedding; feature-extractor preprocessing is folded into w/b
    patch_emb = patch_embed(image_nchw, params["patch_w"], params["patch_b"],
                            cfg["patch"])
    B, nP, D = patch_emb.shape
    # 3. CLS/dist tokens, position embeddings and padding are fused into the
    #    encoder kernel's first layer iteration; sequence padded to 128.
    s_pad = _round_up(nP + 2, 128)
    # 4+5. fused encoder stack + final layernorm on the CLS token
    return encoder_stack(patch_emb, params, num_heads=cfg["num_heads"],
                         eps=cfg["eps"], s_pad=s_pad)


# -----------------------------------------------------------------------------
# Parameter construction / one-time inference weight prep.
# -----------------------------------------------------------------------------
def init_raw_params(key, cfg):
    C, P, D = cfg["channels"], cfg["patch"], cfg["hidden"]
    Dff, L = cfg["d_ff"], cfg["num_layers"]
    n_pos = cfg["num_patches"] + 2

    def normal(k, shape, scale=0.02):
        return scale * jax.random.normal(k, shape, dtype=jnp.float32)

    keys = iter(jax.random.split(key, 5 + 12 * L))
    params = {
        "image_mean": jnp.array([0.485, 0.456, 0.406][:C], dtype=jnp.float32),
        "image_std": jnp.array([0.229, 0.224, 0.225][:C], dtype=jnp.float32),
        "conv_w": normal(next(keys), (D, C, P, P)),
        "conv_b": normal(next(keys), (D,)),
        "cls_token": normal(next(keys), (1, 1, D)),
        "dist_token": normal(next(keys), (1, 1, D)),
        "pos_emb": normal(next(keys), (1, n_pos, D)),
        "ln_f_g": jnp.ones((D,), jnp.float32),
        "ln_f_b": jnp.zeros((D,), jnp.float32),
        "layers": [],
    }
    for _ in range(L):
        lp = {
            "ln1_g": jnp.ones((1, D), jnp.float32),
            "ln1_b": jnp.zeros((1, D), jnp.float32),
            "wq": normal(next(keys), (D, D)), "bq": normal(next(keys), (1, D)),
            "wk": normal(next(keys), (D, D)), "bk": normal(next(keys), (1, D)),
            "wv": normal(next(keys), (D, D)), "bv": normal(next(keys), (1, D)),
            "wo": normal(next(keys), (D, D)), "bo": normal(next(keys), (1, D)),
            "ln2_g": jnp.ones((1, D), jnp.float32),
            "ln2_b": jnp.zeros((1, D), jnp.float32),
            "w1": normal(next(keys), (D, Dff)), "b1": normal(next(keys), (1, Dff)),
            "w2": normal(next(keys), (Dff, D)), "b2": normal(next(keys), (1, D)),
        }
        params["layers"].append(lp)
    return params


def prepare_params(raw, cfg):
    """Fold preprocessing into the patch conv, fold position embeddings into the
    cls/dist tokens, stack per-layer weights along L, cast matmul weights to
    bf16 (biases / LN params stay f32)."""
    C, P, D = cfg["channels"], cfg["patch"], cfg["hidden"]
    r = (1.0 / 255.0) if cfg["do_rescale"] else 1.0
    mean, std = raw["image_mean"], raw["image_std"]
    scale = r / std                                   # (C,)
    shift = mean / std                                 # (C,)
    w = raw["conv_w"]                                  # (D, C, P, P)
    w_folded = w * scale[None, :, None, None]
    b_folded = raw["conv_b"] - jnp.sum(w * shift[None, :, None, None],
                                       axis=(1, 2, 3))
    pos = raw["pos_emb"][0]                            # (n_pos, D)
    cls = raw["cls_token"].reshape(1, D)
    dist = raw["dist_token"].reshape(1, D)
    params = {
        "patch_w": w_folded.reshape(D, C * P * P).T.astype(jnp.float32),   # (K, D)
        "patch_b": b_folded.reshape(1, D).astype(jnp.float32),
        "tok_pos": jnp.concatenate([cls + pos[0:1], dist + pos[1:2]],
                                   axis=0).astype(jnp.float32),            # (2, D)
        "pos_patch": pos[2:].astype(jnp.float32),                          # (nP, D)
        "ln_f_g": raw["ln_f_g"].reshape(1, D).astype(jnp.float32),
        "ln_f_b": raw["ln_f_b"].reshape(1, D).astype(jnp.float32),
    }
    bf, f32 = jnp.bfloat16, jnp.float32
    for name, dt in [("ln1_g", f32), ("ln1_b", f32),
                     ("wq", bf), ("bq", f32), ("wk", bf), ("bk", f32),
                     ("wv", bf), ("bv", f32), ("wo", bf), ("bo", f32),
                     ("ln2_g", f32), ("ln2_b", f32),
                     ("w1", bf), ("b1", f32), ("w2", bf), ("b2", f32)]:
        params[name] = jnp.stack([lp[name] for lp in raw["layers"]]).astype(dt)
    return params


if __name__ == "__main__":
    # Small DeiT-like config: image 32x32, patch 16 -> 4 patches, seq = 6 (->128).
    cfg = {
        "channels": 3,
        "image_size": 32,
        "patch": 16,
        "hidden": 32,
        "num_heads": 2,
        "num_layers": 2,
        "d_ff": 128,
        "eps": 1e-12,
        "do_rescale": True,
    }
    cfg["num_patches"] = (cfg["image_size"] // cfg["patch"]) ** 2

    key = jax.random.PRNGKey(0)
    k_img, k_par = jax.random.split(key)
    # raw pixel values in [0, 255), NCHW like the PyTorch module's input
    image = jax.random.uniform(
        k_img, (2, cfg["channels"], cfg["image_size"], cfg["image_size"]),
        dtype=jnp.float32, minval=0.0, maxval=255.0,
    )
    raw_params = init_raw_params(k_par, cfg)
    params = prepare_params(raw_params, cfg)

    embeddings = deit_forward(image, params, cfg)
    jax.block_until_ready(embeddings)
    assert embeddings.shape == (2, cfg["hidden"])
    assert bool(jnp.all(jnp.isfinite(embeddings)))
    print("KERNEL_OK")
</pallas_src>

<mosaic_0001>
module attributes {stable_mosaic.version = 11 : i64} {
  func.func @patch_embed_kernel(%arg0: i32, %arg1: memref<8x768xf32, #tpu.memory_space<vmem>>, %arg2: memref<768x32xf32, #tpu.memory_space<vmem>>, %arg3: memref<1x32xf32, #tpu.memory_space<vmem>>, %arg4: memref<8x32xf32, #tpu.memory_space<vmem>>) attributes {dimension_semantics = [#tpu.dimension_semantics<parallel>], iteration_bounds = array<i64: 1>, scalar_prefetch = 0 : i64, scratch_operands = 0 : i64, tpu.core_type = #tpu.core_type<tc>, window_params = [{transform_indices = @transform_0, window_bounds = array<i64: 8, 768>}, {pipeline_mode = #tpu.pipeline_mode<synchronous>, transform_indices = @transform_1, window_bounds = array<i64: 768, 32>}, {pipeline_mode = #tpu.pipeline_mode<synchronous>, transform_indices = @transform_2, window_bounds = array<i64: 1, 32>}, {transform_indices = @transform_3, window_bounds = array<i64: 8, 32>}]} {
    %c0 = arith.constant 0 : index
    %c0_0 = arith.constant 0 : index
    %0 = vector.load %arg1[%c0, %c0_0] : memref<8x768xf32, #tpu.memory_space<vmem>>, vector<8x768xf32>
    %c0_1 = arith.constant 0 : index
    %c0_2 = arith.constant 0 : index
    %1 = vector.load %arg2[%c0_1, %c0_2] : memref<768x32xf32, #tpu.memory_space<vmem>>, vector<768x32xf32>
    %cst = arith.constant dense<0.000000e+00> : vector<8x32xf32>
    %2 = tpu.matmul %0, %1, %cst {dimension_numbers = #tpu.dot_dimension_numbers<[1], [0], [0], [1], [0, 0, 1, 1], [], []>} : vector<8x768xf32>, vector<768x32xf32>, vector<8x32xf32> -> vector<8x32xf32>
    %c0_3 = arith.constant 0 : index
    %c0_4 = arith.constant 0 : index
    %3 = vector.load %arg3[%c0_3, %c0_4] : memref<1x32xf32, #tpu.memory_space<vmem>>, vector<1x32xf32>
    %4 = vector.broadcast %3 : vector<1x32xf32> to vector<8x32xf32>
    %5 = arith.addf %2, %4 : vector<8x32xf32>
    %c0_5 = arith.constant 0 : index
    %c0_6 = arith.constant 0 : index
    %6 = vector.load %arg4[%c0_5, %c0_6] : memref<8x32xf32, #tpu.memory_space<vmem>>, vector<8x32xf32>
    tpu.vector_store %arg4[%c0_5, %c0_6], %5 {strides = array<i32>} : memref<8x32xf32, #tpu.memory_space<vmem>>, vector<8x32xf32>,
    return
  }
  func.func @transform_0(%arg0: i32) -> (i32, i32) {
    %c0_i32 = arith.constant 0 : i32
    %c0_i32_0 = arith.constant 0 : i32
    return %arg0, %c0_i32 : i32, i32
  }
  func.func @transform_1(%arg0: i32) -> (i32, i32) {
    %c0_i32 = arith.constant 0 : i32
    %c0_i32_0 = arith.constant 0 : i32
    %c0_i32_1 = arith.constant 0 : i32
    return %c0_i32, %c0_i32_0 : i32, i32
  }
  func.func @transform_2(%arg0: i32) -> (i32, i32) {
    %c0_i32 = arith.constant 0 : i32
    %c0_i32_0 = arith.constant 0 : i32
    %c0_i32_1 = arith.constant 0 : i32
    return %c0_i32, %c0_i32_0 : i32, i32
  }
  func.func @transform_3(%arg0: i32) -> (i32, i32) {
    %c0_i32 = arith.constant 0 : i32
    %c0_i32_0 = arith.constant 0 : i32
    return %arg0, %c0_i32 : i32, i32
  }
}

</mosaic_0001>

<llo_original>
// kernel: tpu_custom_call.1
$region0: #{tpu_custom_call.1}
  #allocation0 [shape = 'u32[]', space=smem, size = 0x4, offset = 0x4, fixed_abs, tag = 'smem constant byte address 0x4 - core index']
  #allocation1 [shape = 'u32[144,128]{1,0:T(1,128)}', space=vmem, size = 0x12000, scoped, tag = 'internal scratch']
  %s0 = inlined_call_operand.vmem [shape: f32[8,768], index: 0, kind: input, shape index: {}]
  %s1 = inlined_call_operand.vmem [shape: f32[768,32], index: 1, kind: input, shape index: {}]
  %s2 = inlined_call_operand.vmem [shape: f32[1,32], index: 2, kind: input, shape index: {}]
  %s3 = inlined_call_operand.hbm [shape: f32[8,32], index: 3, kind: output, shape index: {}]
  %s4 = sld [smem:[#allocation0]]
  $region22: #{tpu_custom_call.1} parent=0
    _
  %s6 = ssub.s32 1, %s4
  %s7 = scalar_select 0, %s6, %s4
  $region1: #{tpu_custom_call.1} parent=0
    #allocation2 [shape = 'u8[4096]{0}', space=vmem, size = 0x1000, scoped, tag = 'output window, operand 0, single buffered']
    #allocation3 [shape = 's32[1]{0}', space=sflag, size = 0x4, scoped, tag = 'scoped memory for tpu_custom_call.1']
    %8 = vsyncpa [#allocation3], 0
    // Predicated region
    $region2: #{tpu_custom_call.1} parent=1 // pred_check
      _
    $region3: #{tpu_custom_call.1} parent=1 // pred_check_branch
      %10 = sbr.rel (0) target = $region5
    $region4: #{tpu_custom_call.1} parent=1 // pred_region
      _
    $region5: #{tpu_custom_call.1} parent=1 // pred_fallthru
      _
    // Predicated region
    $region6: #{tpu_custom_call.1} parent=1 // pred_check
      _
    $region7: #{tpu_custom_call.1} parent=1 // pred_check_branch
      %12 = sbr.rel (0) target = $region9
    $region8: #{tpu_custom_call.1} parent=1 // pred_region
      _
    $region9: #{tpu_custom_call.1} parent=1 // pred_fallthru
      _
    // Predicated region
    $region10: #{tpu_custom_call.1} parent=1 // pred_check
      _
    $region11: #{tpu_custom_call.1} parent=1 // pred_check_branch
      %14 = sbr.rel (0) target = $region13
    $region12: #{tpu_custom_call.1} parent=1 // pred_region
      _
    $region13: #{tpu_custom_call.1} parent=1 // pred_fallthru
      _
    %v15 = vld [vmem:[%s0] sm:$0xff]
    %v16 = vld [vmem:[%s0 + $0x8] sm:$0xff]
    %v17 = vld [vmem:[%s0 + $0x10] sm:$0xff]
    %v18 = vld [vmem:[%s0 + $0x18] sm:$0xff]
    %v19 = vld [vmem:[%s0 + $0x20] sm:$0xff]
    %v20 = vld [vmem:[%s0 + $0x28] sm:$0xff]
    %v21 = vld [vmem:[%s1] sm:$0xff]
    %v22 = vld [vmem:[%s1 + $0x8] sm:$0xff]
    %v23 = vld [vmem:[%s1 + $0x10] sm:$0xff]
    %v24 = vld [vmem:[%s1 + $0x18] sm:$0xff]
    %v25 = vld [vmem:[%s1 + $0x20] sm:$0xff]
    %v26 = vld [vmem:[%s1 + $0x28] sm:$0xff]
    %v27 = vld [vmem:[%s1 + $0x30] sm:$0xff]
    %v28 = vld [vmem:[%s1 + $0x38] sm:$0xff]
    %v29 = vld [vmem:[%s1 + $0x40] sm:$0xff]
    %v30 = vld [vmem:[%s1 + $0x48] sm:$0xff]
    %v31 = vld [vmem:[%s1 + $0x50] sm:$0xff]
    %v32 = vld [vmem:[%s1 + $0x58] sm:$0xff]
    %v33 = vld [vmem:[%s1 + $0x60] sm:$0xff]
    %v34 = vld [vmem:[%s1 + $0x68] sm:$0xff]
    %v35 = vld [vmem:[%s1 + $0x70] sm:$0xff]
    %v36 = vld [vmem:[%s1 + $0x78] sm:$0xff]
    %v37 = vld [vmem:[%s1 + $0x80] sm:$0xff]
    %v38 = vld [vmem:[%s1 + $0x88] sm:$0xff]
    %v39 = vld [vmem:[%s1 + $0x90] sm:$0xff]
    %v40 = vld [vmem:[%s1 + $0x98] sm:$0xff]
    %v41 = vld [vmem:[%s1 + $0xa0] sm:$0xff]
    %v42 = vld [vmem:[%s1 + $0xa8] sm:$0xff]
    %v43 = vld [vmem:[%s1 + $0xb0] sm:$0xff]
    %v44 = vld [vmem:[%s1 + $0xb8] sm:$0xff]
    %v45 = vld [vmem:[%s1 + $0xc0] sm:$0xff]
    %v46 = vld [vmem:[%s1 + $0xc8] sm:$0xff]
    %v47 = vld [vmem:[%s1 + $0xd0] sm:$0xff]
    %v48 = vld [vmem:[%s1 + $0xd8] sm:$0xff]
    %v49 = vld [vmem:[%s1 + $0xe0] sm:$0xff]
    %v50 = vld [vmem:[%s1 + $0xe8] sm:$0xff]
    %v51 = vld [vmem:[%s1 + $0xf0] sm:$0xff]
    %v52 = vld [vmem:[%s1 + $0xf8] sm:$0xff]
    %v53 = vld [vmem:[%s1 + $0x100] sm:$0xff]
    %v54 = vld [vmem:[%s1 + $0x108] sm:$0xff]
    %v55 = vld [vmem:[%s1 + $0x110] sm:$0xff]
    %v56 = vld [vmem:[%s1 + $0x118] sm:$0xff]
    %v57 = vld [vmem:[%s1 + $0x120] sm:$0xff]
    %v58 = vld [vmem:[%s1 + $0x128] sm:$0xff]
    %v59 = vld [vmem:[%s1 + $0x130] sm:$0xff]
    %v60 = vld [vmem:[%s1 + $0x138] sm:$0xff]
    %v61 = vld [vmem:[%s1 + $0x140] sm:$0xff]
    %v62 = vld [vmem:[%s1 + $0x148] sm:$0xff]
    %v63 = vld [vmem:[%s1 + $0x150] sm:$0xff]
    %v64 = vld [vmem:[%s1 + $0x158] sm:$0xff]
    %v65 = vld [vmem:[%s1 + $0x160] sm:$0xff]
    %v66 = vld [vmem:[%s1 + $0x168] sm:$0xff]
    %v67 = vld [vmem:[%s1 + $0x170] sm:$0xff]
    %v68 = vld [vmem:[%s1 + $0x178] sm:$0xff]
    %v69 = vld [vmem:[%s1 + $0x180] sm:$0xff]
    %v70 = vld [vmem:[%s1 + $0x188] sm:$0xff]
    %v71 = vld [vmem:[%s1 + $0x190] sm:$0xff]
    %v72 = vld [vmem:[%s1 + $0x198] sm:$0xff]
    %v73 = vld [vmem:[%s1 + $0x1a0] sm:$0xff]
    %v74 = vld [vmem:[%s1 + $0x1a8] sm:$0xff]
    %v75 = vld [vmem:[%s1 + $0x1b0] sm:$0xff]
    %v76 = vld [vmem:[%s1 + $0x1b8] sm:$0xff]
    %v77 = vld [vmem:[%s1 + $0x1c0] sm:$0xff]
    %v78 = vld [vmem:[%s1 + $0x1c8] sm:$0xff]
    %v79 = vld [vmem:[%s1 + $0x1d0] sm:$0xff]
    %v80 = vld [vmem:[%s1 + $0x1d8] sm:$0xff]
    %v81 = vld [vmem:[%s1 + $0x1e0] sm:$0xff]
    %v82 = vld [vmem:[%s1 + $0x1e8] sm:$0xff]
    %v83 = vld [vmem:[%s1 + $0x1f0] sm:$0xff]
    %v84 = vld [vmem:[%s1 + $0x1f8] sm:$0xff]
    %v85 = vld [vmem:[%s1 + $0x200] sm:$0xff]
    %v86 = vld [vmem:[%s1 + $0x208] sm:$0xff]
    %v87 = vld [vmem:[%s1 + $0x210] sm:$0xff]
    %v88 = vld [vmem:[%s1 + $0x218] sm:$0xff]
    %v89 = vld [vmem:[%s1 + $0x220] sm:$0xff]
    %v90 = vld [vmem:[%s1 + $0x228] sm:$0xff]
    %v91 = vld [vmem:[%s1 + $0x230] sm:$0xff]
    %v92 = vld [vmem:[%s1 + $0x238] sm:$0xff]
    %v93 = vld [vmem:[%s1 + $0x240] sm:$0xff]
    %v94 = vld [vmem:[%s1 + $0x248] sm:$0xff]
    %v95 = vld [vmem:[%s1 + $0x250] sm:$0xff]
    %v96 = vld [vmem:[%s1 + $0x258] sm:$0xff]
    %v97 = vld [vmem:[%s1 + $0x260] sm:$0xff]
    %v98 = vld [vmem:[%s1 + $0x268] sm:$0xff]
    %v99 = vld [vmem:[%s1 + $0x270] sm:$0xff]
    %v100 = vld [vmem:[%s1 + $0x278] sm:$0xff]
    %v101 = vld [vmem:[%s1 + $0x280] sm:$0xff]
    %v102 = vld [vmem:[%s1 + $0x288] sm:$0xff]
    %v103 = vld [vmem:[%s1 + $0x290] sm:$0xff]
    %v104 = vld [vmem:[%s1 + $0x298] sm:$0xff]
    %v105 = vld [vmem:[%s1 + $0x2a0] sm:$0xff]
    %v106 = vld [vmem:[%s1 + $0x2a8] sm:$0xff]
    %v107 = vld [vmem:[%s1 + $0x2b0] sm:$0xff]
    %v108 = vld [vmem:[%s1 + $0x2b8] sm:$0xff]
    %v109 = vld [vmem:[%s1 + $0x2c0] sm:$0xff]
    %v110 = vld [vmem:[%s1 + $0x2c8] sm:$0xff]
    %v111 = vld [vmem:[%s1 + $0x2d0] sm:$0xff]
    %v112 = vld [vmem:[%s1 + $0x2d8] sm:$0xff]
    %v113 = vld [vmem:[%s1 + $0x2e0] sm:$0xff]
    %v114 = vld [vmem:[%s1 + $0x2e8] sm:$0xff]
    %v115 = vld [vmem:[%s1 + $0x2f0] sm:$0xff]
    %v116 = vld [vmem:[%s1 + $0x2f8] sm:$0xff]
    %v117 = vld [vmem:[%s2] sm:$0x1]
    %v119 = vlaneseq
    %v120 = vshrl.u32 %v119, 7
    %v121 = vsub.s32 0, %v120
    %v122 = vrot.slane %v117, %v121
    %124 = vmatprep.subr.mxu0 0.0
    %125 = vmatpush1.msra.mxu0 %v21
    %126 = vmatprep.subr.mxu0 0.0
    %127 = vmatpush1.msra.mxu0 %v22
    %128 = vmatprep.subr.mxu0 0.0
    %129 = vmatpush1.msra.mxu0 %v23
    %130 = vmatprep.subr.mxu0 0.0
    %131 = vmatpush1.msra.mxu0 %v24
    %132 = vmatprep.subr.mxu0 0.0
    %133 = vmatpush1.msra.mxu0 %v25
    %134 = vmatprep.subr.mxu0 0.0
    %135 = vmatpush1.msra.mxu0 %v26
    %136 = vmatprep.subr.mxu0 0.0
    %137 = vmatpush1.msra.mxu0 %v27
    %138 = vmatprep.subr.mxu0 0.0
    %139 = vmatpush1.msra.mxu0 %v28
    %140 = vmatprep.subr.mxu0 0.0
    %141 = vmatpush1.msra.mxu0 %v29
    %142 = vmatprep.subr.mxu0 0.0
    %143 = vmatpush1.msra.mxu0 %v30
    %144 = vmatprep.subr.mxu0 0.0
    %145 = vmatpush1.msra.mxu0 %v31
    %146 = vmatprep.subr.mxu0 0.0
    %147 = vmatpush1.msra.mxu0 %v32
    %148 = vmatprep.subr.mxu0 0.0
    %149 = vmatpush1.msra.mxu0 %v33
    %150 = vmatprep.subr.mxu0 0.0
    %151 = vmatpush1.msra.mxu0 %v34
    %152 = vmatprep.subr.mxu0 0.0
    %153 = vmatpush1.msra.mxu0 %v35
    %154 = vmatprep.subr.mxu0 0.0
    %155 = vmatpush1.msra.mxu0 %v36
    %156 = vmatprep.subr.mxu0 0.0
    %157 = vmatpush1.msra.mxu0 %v37
    %158 = vmatprep.subr.mxu0 0.0
    %159 = vmatpush1.msra.mxu0 %v38
    %160 = vmatprep.subr.mxu0 0.0
    %161 = vmatpush1.msra.mxu0 %v39
    %162 = vmatprep.subr.mxu0 0.0
    %163 = vmatpush1.msra.mxu0 %v40
    %164 = vmatprep.subr.mxu0 0.0
    %165 = vmatpush1.msra.mxu0 %v41
    %166 = vmatprep.subr.mxu0 0.0
    %167 = vmatpush1.msra.mxu0 %v42
    %168 = vmatprep.subr.mxu0 0.0
    %169 = vmatpush1.msra.mxu0 %v43
    %170 = vmatprep.subr.mxu0 0.0
    %171 = vmatpush1.msra.mxu0 %v44
    %172 = vmatprep.subr.mxu0 0.0
    %173 = vmatpush1.msra.mxu0 %v45
    %174 = vmatprep.subr.mxu0 0.0
    %175 = vmatpush1.msra.mxu0 %v46
    %176 = vmatprep.subr.mxu0 0.0
    %177 = vmatpush1.msra.mxu0 %v47
    %178 = vmatprep.subr.mxu0 0.0
    %179 = vmatpush1.msra.mxu0 %v48
    %180 = vmatprep.subr.mxu0 0.0
    %181 = vmatpush1.msra.mxu0 %v49
    %182 = vmatprep.subr.mxu0 0.0
    %183 = vmatpush1.msra.mxu0 %v50
    %184 = vmatprep.subr.mxu0 0.0
    %185 = vmatpush1.msra.mxu0 %v51
    %186 = vmatprep.subr.mxu0 0.0
    %187 = vmatpush1.msra.mxu0 %v52
    %188 = vmatprep.mubr.f32.mxu0 %v16
    %189 = vmatmul.mubr.f32.gmra.mrb[0].mxu0 %v15
    %v190 = vpop.f32.mrb[0].mxu0
    %v191 = vadd.f32 %v122, %v190
    %v192 = vpop.f32.mrb[0].mxu0
    %193 = vdwg.mxu0
    %194 = vmatprep.subr.mxu0 0.0
    %195 = vmatpush1.msra.mxu0 %v53
    %196 = vmatprep.subr.mxu0 0.0
    %197 = vmatpush1.msra.mxu0 %v54
    %198 = vmatprep.subr.mxu0 0.0
    %199 = vmatpush1.msra.mxu0 %v55
    %200 = vmatprep.subr.mxu0 0.0
    %201 = vmatpush1.msra.mxu0 %v56
    %202 = vmatprep.subr.mxu0 0.0
    %203 = vmatpush1.msra.mxu0 %v57
    %204 = vmatprep.subr.mxu0 0.0
    %205 = vmatpush1.msra.mxu0 %v58
    %206 = vmatprep.subr.mxu0 0.0
    %207 = vmatpush1.msra.mxu0 %v59
    %208 = vmatprep.subr.mxu0 0.0
    %209 = vmatpush1.msra.mxu0 %v60
    %210 = vmatprep.subr.mxu0 0.0
    %211 = vmatpush1.msra.mxu0 %v61
    %212 = vmatprep.subr.mxu0 0.0
    %213 = vmatpush1.msra.mxu0 %v62
    %214 = vmatprep.subr.mxu0 0.0
    %215 = vmatpush1.msra.mxu0 %v63
    %216 = vmatprep.subr.mxu0 0.0
    %217 = vmatpush1.msra.mxu0 %v64
    %218 = vmatprep.subr.mxu0 0.0
    %219 = vmatpush1.msra.mxu0 %v65
    %220 = vmatprep.subr.mxu0 0.0
    %221 = vmatpush1.msra.mxu0 %v66
    %222 = vmatprep.subr.mxu0 0.0
    %223 = vmatpush1.msra.mxu0 %v67
    %224 = vmatprep.subr.mxu0 0.0
    %225 = vmatpush1.msra.mxu0 %v68
    %226 = vmatprep.subr.mxu0 0.0
    %227 = vmatpush1.msra.mxu0 %v69
    %228 = vmatprep.subr.mxu0 0.0
    %229 = vmatpush1.msra.mxu0 %v70
    %230 = vmatprep.subr.mxu0 0.0
    %231 = vmatpush1.msra.mxu0 %v71
    %232 = vmatprep.subr.mxu0 0.0
    %233 = vmatpush1.msra.mxu0 %v72
    %234 = vmatprep.subr.mxu0 0.0
    %235 = vmatpush1.msra.mxu0 %v73
    %236 = vmatprep.subr.mxu0 0.0
    %237 = vmatpush1.msra.mxu0 %v74
    %238 = vmatprep.subr.mxu0 0.0
    %239 = vmatpush1.msra.mxu0 %v75
    %240 = vmatprep.subr.mxu0 0.0
    %241 = vmatpush1.msra.mxu0 %v76
    %242 = vmatprep.subr.mxu0 0.0
    %243 = vmatpush1.msra.mxu0 %v77
    %244 = vmatprep.subr.mxu0 0.0
    %245 = vmatpush1.msra.mxu0 %v78
    %246 = vmatprep.subr.mxu0 0.0
    %247 = vmatpush1.msra.mxu0 %v79
    %248 = vmatprep.subr.mxu0 0.0
    %249 = vmatpush1.msra.mxu0 %v80
    %250 = vmatprep.subr.mxu0 0.0
    %251 = vmatpush1.msra.mxu0 %v81
    %252 = vmatprep.subr.mxu0 0.0
    %253 = vmatpush1.msra.mxu0 %v82
    %254 = vmatprep.subr.mxu0 0.0
    %255 = vmatpush1.msra.mxu0 %v83
    %256 = vmatprep.subr.mxu0 0.0
    %257 = vmatpush1.msra.mxu0 %v84
    %258 = vmatprep.mubr.f32.mxu0 %v18
    %259 = vmatmul.mubr.f32.gmra.mrb[0].mxu0 %v17
    %v260 = vpop.f32.mrb[0].mxu0
    %v261 = vadd.f32 %v191, %v260
    %v262 = vpop.f32.mrb[0].mxu0
    %263 = vdwg.mxu0
    %264 = vmatprep.subr.mxu0 0.0
    %265 = vmatpush1.msra.mxu0 %v85
    %266 = vmatprep.subr.mxu0 0.0
    %267 = vmatpush1.msra.mxu0 %v86
    %268 = vmatprep.subr.mxu0 0.0
    %269 = vmatpush1.msra.mxu0 %v87
    %270 = vmatprep.subr.mxu0 0.0
    %271 = vmatpush1.msra.mxu0 %v88
    %272 = vmatprep.subr.mxu0 0.0
    %273 = vmatpush1.msra.mxu0 %v89
    %274 = vmatprep.subr.mxu0 0.0
    %275 = vmatpush1.msra.mxu0 %v90
    %276 = vmatprep.subr.mxu0 0.0
    %277 = vmatpush1.msra.mxu0 %v91
    %278 = vmatprep.subr.mxu0 0.0
    %279 = vmatpush1.msra.mxu0 %v92
    %280 = vmatprep.subr.mxu0 0.0
    %281 = vmatpush1.msra.mxu0 %v93
    %282 = vmatprep.subr.mxu0 0.0
    %283 = vmatpush1.msra.mxu0 %v94
    %284 = vmatprep.subr.mxu0 0.0
    %285 = vmatpush1.msra.mxu0 %v95
    %286 = vmatprep.subr.mxu0 0.0
    %287 = vmatpush1.msra.mxu0 %v96
    %288 = vmatprep.subr.mxu0 0.0
    %289 = vmatpush1.msra.mxu0 %v97
    %290 = vmatprep.subr.mxu0 0.0
    %291 = vmatpush1.msra.mxu0 %v98
    %292 = vmatprep.subr.mxu0 0.0
    %293 = vmatpush1.msra.mxu0 %v99
    %294 = vmatprep.subr.mxu0 0.0
    %295 = vmatpush1.msra.mxu0 %v100
    %296 = vmatprep.subr.mxu0 0.0
    %297 = vmatpush1.msra.mxu0 %v101
    %298 = vmatprep.subr.mxu0 0.0
    %299 = vmatpush1.msra.mxu0 %v102
    %300 = vmatprep.subr.mxu0 0.0
    %301 = vmatpush1.msra.mxu0 %v103
    %302 = vmatprep.subr.mxu0 0.0
    %303 = vmatpush1.msra.mxu0 %v104
    %304 = vmatprep.subr.mxu0 0.0
    %305 = vmatpush1.msra.mxu0 %v105
    %306 = vmatprep.subr.mxu0 0.0
    %307 = vmatpush1.msra.mxu0 %v106
    %308 = vmatprep.subr.mxu0 0.0
    %309 = vmatpush1.msra.mxu0 %v107
    %310 = vmatprep.subr.mxu0 0.0
    %311 = vmatpush1.msra.mxu0 %v108
    %312 = vmatprep.subr.mxu0 0.0
    %313 = vmatpush1.msra.mxu0 %v109
    %314 = vmatprep.subr.mxu0 0.0
    %315 = vmatpush1.msra.mxu0 %v110
    %316 = vmatprep.subr.mxu0 0.0
    %317 = vmatpush1.msra.mxu0 %v111
    %318 = vmatprep.subr.mxu0 0.0
    %319 = vmatpush1.msra.mxu0 %v112
    %320 = vmatprep.subr.mxu0 0.0
    %321 = vmatpush1.msra.mxu0 %v113
    %322 = vmatprep.subr.mxu0 0.0
    %323 = vmatpush1.msra.mxu0 %v114
    %324 = vmatprep.subr.mxu0 0.0
    %325 = vmatpush1.msra.mxu0 %v115
    %326 = vmatprep.subr.mxu0 0.0
    %327 = vmatpush1.msra.mxu0 %v116
    %328 = vmatprep.mubr.f32.mxu0 %v20
    %329 = vmatmul.mubr.f32.gmra.mrb[0].mxu0 %v19
    %v330 = vpop.f32.mrb[0].mxu0
    %v331 = vadd.f32 %v261, %v330
    %v332 = vpop.f32.mrb[0].mxu0
    %333 = vdwg.mxu0
    %vm334 = vcmask 261120
    %335 = vst.msk [vmem:[#allocation2] sm:$0xff] %vm334, %v331
    // Predicated region
    $region14: #{tpu_custom_call.1} parent=1 // pred_check
      _
    $region15: #{tpu_custom_call.1} parent=1 // pred_check_branch
      %337 = sbr.rel (0) target = $region17
    $region16: #{tpu_custom_call.1} parent=1 // pred_region
      %s339 = ssub.s32 128, 128
      %340 = vsyncadd [#allocation3], %s339
      %s342 = sshll.u32 [#allocation2], 4
      %s343 = int_to_ptr.vmem [resolvable:$true] %s342
      %345 = dma.vmem_to_hbm [thread:$0]  %s343, 128, %s3, [#allocation3]
    $region17: #{tpu_custom_call.1} parent=1 // pred_fallthru
      _
    // Predicated region
    $region18: #{tpu_custom_call.1} parent=1 // pred_check
      _
    $region19: #{tpu_custom_call.1} parent=1 // pred_check_branch
      %347 = sbr.rel (0) target = $region21
    $region20: #{tpu_custom_call.1} parent=1 // pred_region
      %348 = dma.done [#allocation3], 128
    $region21: #{tpu_custom_call.1} parent=1 // pred_fallthru
      _
    %349 = vsyncpa [#allocation3], 1

</llo_original>
